<compile_context>
chip_gen: v7x
topology: tpu7x:2x2x1
jax: 0.10.0
libtpu: 0.0.40
codegen_flags: <defaults>
</compile_context>

<pallas_src>
import math
import numpy as np
import jax
import jax.numpy as jnp
from jax.experimental import pallas as pl
from jax.experimental.pallas import tpu as pltpu

# ---- RectifiedFlow config (deterministic, set in-script) --------------------
GAUSSIAN_FILTER_STD = 1.0          # mollifier_type='conv'
NUM_TIMESTEPS = 1000
LOGIT_MEAN, LOGIT_STD, LOGIT_EPS = 0.75, 1.0, 1e-6
KSIZE = math.ceil(GAUSSIAN_FILTER_STD * 4 + 1)
KSIZE = KSIZE + 1 if KSIZE % 2 == 0 else KSIZE        # -> 5
PAD = (KSIZE - 1) // 2                                # -> 2


def _gaussian_kernel1d(ksize: int, sigma: float) -> np.ndarray:
    """Normalized 1-D gaussian (tgm.get_gaussian_kernel2d = outer(g1d, g1d))."""
    x = np.arange(ksize, dtype=np.float64) - ksize // 2
    if ksize % 2 == 0:
        x = x + 0.5
    g = np.exp(-(x ** 2) / (2.0 * sigma ** 2))
    return (g / g.sum()).astype(np.float32)


def _gaussian_kernel2d(ksize: int, sigma: float) -> np.ndarray:
    g = _gaussian_kernel1d(ksize, sigma).astype(np.float64)
    return np.outer(g, g).astype(np.float32)


# --------------------------- fused Pallas kernel -----------------------------
def _make_fused_kernel(g1d: np.ndarray, C: int, H: int, W: int):
    K = len(g1d)
    p = (K - 1) // 2
    taps = [float(v) for v in g1d]
    inv_F = 1.0 / float(C * H * W)

    def kernel(t_ref, x_ref, n_ref, pred_ref, xt_ref, mse_ref, wpad_ref, hpad_ref):
        # t_ref    : (B,) f32 in SMEM (whole array)
        # x_ref    : (1, C, H, W)  x_start block
        # n_ref    : (1, C, H, W)  noise block (conv input AND mse target)
        # pred_ref : (1, C, H, W)  model output block
        # xt_ref   : (1, C, H, W)  x_t output block
        # mse_ref  : (1, 8, 128)   per-batch mse broadcast into an aligned tile
        # wpad_ref : (C, H, W+2p)  VMEM scratch, W-reflect halo
        # hpad_ref : (C, H+2p, W)  VMEM scratch, H-reflect halo
        b = pl.program_id(0)

        noise = n_ref[0].astype(jnp.float32)            # read noise exactly once

        # ---- separable depthwise gaussian with in-VMEM reflect halos ----
        # horizontal pass (W / lane axis)
        wpad_ref[:, :, p:p + W] = noise
        for k in range(p):                              # reflect (no edge repeat)
            wpad_ref[:, :, k:k + 1] = noise[:, :, p - k:p - k + 1]
            wpad_ref[:, :, p + W + k:p + W + k + 1] = noise[:, :, W - 2 - k:W - 1 - k]
        yh = taps[0] * wpad_ref[:, :, 0:W]
        for j in range(1, K):
            yh = yh + taps[j] * wpad_ref[:, :, j:j + W]

        # vertical pass (H / sublane axis)
        hpad_ref[:, p:p + H, :] = yh
        for k in range(p):
            hpad_ref[:, k:k + 1, :] = yh[:, p - k:p - k + 1, :]
            hpad_ref[:, p + H + k:p + H + k + 1, :] = yh[:, H - 2 - k:H - 1 - k, :]
        mn = taps[0] * hpad_ref[:, 0:H, :]
        for i in range(1, K):
            mn = mn + taps[i] * hpad_ref[:, i:i + H, :]

        # ---- x_t = t * x_start + (1 - t) * mollified_noise ----
        t = t_ref[b]
        x0 = x_ref[0].astype(jnp.float32)
        xt_ref[0] = (t * x0 + (1.0 - t) * mn).astype(xt_ref.dtype)

        # ---- mse = mean_flat((noise - model_output)**2), target = EPSILON ----
        diff = noise - pred_ref[0].astype(jnp.float32)
        mse = jnp.sum(diff * diff) * inv_F
        mse_ref[0] = jnp.full((8, 128), mse, dtype=jnp.float32)

    return kernel


def rectified_flow_training_losses(x_start, noise, model_output, t_unit):
    """JAX/Pallas equivalent of RectifiedFlow.training_losses (LossType.MSE,
    ModelMeanType.EPSILON, conv mollifier, no sample_lst / encoder)."""
    B, C, H, W = x_start.shape
    assert H >= PAD + 1 and W >= PAD + 1, "reflect padding requires H, W >= 3"
    g1d = _gaussian_kernel1d(KSIZE, GAUSSIAN_FILTER_STD)

    t32 = jnp.asarray(t_unit, jnp.float32).reshape(B)

    blk = pl.BlockSpec((1, C, H, W), lambda b: (b, 0, 0, 0))

    # VMEM budget: 4 double-buffered (1,C,H,W) blocks + mse tile + 2 halo scratches.
    elem = jnp.dtype(x_start.dtype).itemsize
    block_bytes = C * H * W * elem
    scratch_bytes = (C * H * (W + 2 * PAD) + C * (H + 2 * PAD) * W) * 4
    need = 2 * (4 * block_bytes + 8 * 128 * 4) + scratch_bytes
    vmem_limit = int(min(64 * 2 ** 20, max(16 * 2 ** 20, 4 * need)))

    x_t, mse_blk = pl.pallas_call(
        _make_fused_kernel(g1d, C, H, W),
        out_shape=(jax.ShapeDtypeStruct((B, C, H, W), x_start.dtype),
                   jax.ShapeDtypeStruct((B, 8, 128), jnp.float32)),
        grid=(B,),
        in_specs=[pl.BlockSpec(memory_space=pltpu.MemorySpace.SMEM),  # t (B,)
                  blk,                                                # x_start
                  blk,                                                # noise
                  blk],                                               # model_output
        out_specs=(blk,                                               # x_t
                   pl.BlockSpec((1, 8, 128), lambda b: (b, 0, 0))),   # mse tile
        scratch_shapes=[pltpu.VMEM((C, H, W + 2 * PAD), jnp.float32),
                        pltpu.VMEM((C, H + 2 * PAD, W), jnp.float32)],
        compiler_params=pltpu.CompilerParams(
            dimension_semantics=("parallel",),
            vmem_limit_bytes=vmem_limit),
    )(t32, x_start, noise, model_output)

    mse = mse_blk[:, 0, 0]

    # weights = LogitNormal(0.75, 1.0).pdf(t): pure O(B) scalar work, wrapper-side.
    tc = jnp.clip(t32, LOGIT_EPS, 1.0 - LOGIT_EPS)
    logit_t = jnp.log(tc) - jnp.log1p(-tc)
    z = (logit_t - LOGIT_MEAN) / LOGIT_STD
    log_prob = -0.5 * z * z - math.log(LOGIT_STD) - 0.5 * math.log(2.0 * math.pi)
    weights = jnp.exp(log_prob) * (1.0 / (t32 * (1.0 - t32) + LOGIT_EPS))

    return {
        "x_t": x_t,
        "noise": noise,
        "weights": weights,
        "mse": mse,
        "loss": mse,
        # t passed to the external model would be t_unit * NUM_TIMESTEPS
        "t_model": t32 * NUM_TIMESTEPS,
    }
    # TODO(synk): the external model(x_t, t)/encoder calls, the sample_lst gather
    # and the stochastic-encoding KLD branch are outside this module's own compute.


# ---------------------------- pure-JAX reference -----------------------------
def _reference(x_start, noise, model_output, t_unit):
    B, C, H, W = x_start.shape
    kern2d = _gaussian_kernel2d(KSIZE, GAUSSIAN_FILTER_STD)
    p = PAD
    xpad = jnp.pad(noise.reshape(B * C, H, W).astype(jnp.float32),
                   ((0, 0), (p, p), (p, p)), mode="reflect")
    mn = jnp.zeros((B * C, H, W), jnp.float32)
    for i in range(KSIZE):
        for j in range(KSIZE):
            mn = mn + float(kern2d[i, j]) * xpad[:, i:i + H, j:j + W]
    mn = mn.reshape(B, C, H, W)
    t_e = t_unit.reshape(B, 1, 1, 1)
    x_t = t_e * x_start + (1.0 - t_e) * mn
    mse = jnp.mean((noise - model_output) ** 2, axis=(1, 2, 3))
    tc = jnp.clip(t_unit, LOGIT_EPS, 1.0 - LOGIT_EPS)
    logit_t = jnp.log(tc) - jnp.log1p(-tc)
    z = (logit_t - LOGIT_MEAN) / LOGIT_STD
    log_prob = -0.5 * z * z - math.log(LOGIT_STD) - 0.5 * math.log(2.0 * math.pi)
    w = jnp.exp(log_prob) / (t_unit * (1.0 - t_unit) + LOGIT_EPS)
    return x_t, mse, w


if __name__ == "__main__":
    B, C, H, W = 2, 4, 16, 16
    key = jax.random.PRNGKey(0)
    k1, k2, k3, k4 = jax.random.split(key, 4)
    x_start = jax.random.normal(k1, (B, C, H, W), jnp.float32)
    noise = jax.random.normal(k2, (B, C, H, W), jnp.float32)         # randn_like(x_start)
    model_output = jax.random.normal(k3, (B, C, H, W), jnp.float32)  # stand-in for model(x_t, t)
    t_unit = jax.random.uniform(k4, (B,), jnp.float32)               # torch.rand(batch_size)

    terms = rectified_flow_training_losses(x_start, noise, model_output, t_unit)
    jax.block_until_ready(terms)

    x_t_ref, mse_ref, w_ref = _reference(x_start, noise, model_output, t_unit)
    np.testing.assert_allclose(np.asarray(terms["x_t"]), np.asarray(x_t_ref), rtol=1e-4, atol=1e-5)
    np.testing.assert_allclose(np.asarray(terms["mse"]), np.asarray(mse_ref), rtol=1e-4, atol=1e-5)
    np.testing.assert_allclose(np.asarray(terms["weights"]), np.asarray(w_ref), rtol=1e-3, atol=1e-5)

    print("KERNEL_OK")
</pallas_src>

<mosaic_0001>
module attributes {stable_mosaic.version = 11 : i64} {
  func.func @kernel(%arg0: i32, %arg1: memref<2xf32, #tpu.memory_space<smem>>, %arg2: memref<1x4x16x16xf32, #tpu.memory_space<vmem>>, %arg3: memref<1x4x16x16xf32, #tpu.memory_space<vmem>>, %arg4: memref<1x4x16x16xf32, #tpu.memory_space<vmem>>, %arg5: memref<1x4x16x16xf32, #tpu.memory_space<vmem>>, %arg6: memref<1x8x128xf32, #tpu.memory_space<vmem>>, %arg7: memref<4x16x20xf32, #tpu.memory_space<vmem>>, %arg8: memref<4x20x16xf32, #tpu.memory_space<vmem>>) attributes {dimension_semantics = [#tpu.dimension_semantics<parallel>], iteration_bounds = array<i64: 2>, scalar_prefetch = 0 : i64, scratch_operands = 2 : i64, tpu.core_type = #tpu.core_type<tc>, window_params = [{transform_indices = @transform_0, window_bounds = array<i64: 2>}, {transform_indices = @transform_1, window_bounds = array<i64: 1, 4, 16, 16>}, {transform_indices = @transform_2, window_bounds = array<i64: 1, 4, 16, 16>}, {transform_indices = @transform_3, window_bounds = array<i64: 1, 4, 16, 16>}, {transform_indices = @transform_4, window_bounds = array<i64: 1, 4, 16, 16>}, {transform_indices = @transform_5, window_bounds = array<i64: 1, 8, 128>}]} {
    %c0 = arith.constant 0 : index
    %c0_0 = arith.constant 0 : index
    %c0_1 = arith.constant 0 : index
    %c0_2 = arith.constant 0 : index
    %0 = vector.load %arg3[%c0, %c0_0, %c0_1, %c0_2] : memref<1x4x16x16xf32, #tpu.memory_space<vmem>>, vector<1x4x16x16xf32>
    %1 = vector.shape_cast %0 : vector<1x4x16x16xf32> to vector<4x16x16xf32>
    %c0_3 = arith.constant 0 : index
    %c0_4 = arith.constant 0 : index
    %c2 = arith.constant 2 : index
    %2 = vector.load %arg7[%c0_3, %c0_4, %c2] : memref<4x16x20xf32, #tpu.memory_space<vmem>>, vector<4x16x16xf32>
    tpu.vector_store %arg7[%c0_3, %c0_4, %c2], %1 {strides = array<i32>} : memref<4x16x20xf32, #tpu.memory_space<vmem>>, vector<4x16x16xf32>,
    %3 = vector.extract_strided_slice %1 {offsets = [0, 0, 2], sizes = [4, 16, 1], strides = [1, 1, 1]} : vector<4x16x16xf32> to vector<4x16x1xf32>
    %c0_5 = arith.constant 0 : index
    %c0_6 = arith.constant 0 : index
    %c0_7 = arith.constant 0 : index
    %4 = vector.load %arg7[%c0_5, %c0_6, %c0_7] : memref<4x16x20xf32, #tpu.memory_space<vmem>>, vector<4x16x1xf32>
    tpu.vector_store %arg7[%c0_5, %c0_6, %c0_7], %3 {strides = array<i32>} : memref<4x16x20xf32, #tpu.memory_space<vmem>>, vector<4x16x1xf32>,
    %5 = vector.extract_strided_slice %1 {offsets = [0, 0, 14], sizes = [4, 16, 1], strides = [1, 1, 1]} : vector<4x16x16xf32> to vector<4x16x1xf32>
    %c0_8 = arith.constant 0 : index
    %c0_9 = arith.constant 0 : index
    %c18 = arith.constant 18 : index
    %6 = vector.load %arg7[%c0_8, %c0_9, %c18] : memref<4x16x20xf32, #tpu.memory_space<vmem>>, vector<4x16x1xf32>
    tpu.vector_store %arg7[%c0_8, %c0_9, %c18], %5 {strides = array<i32>} : memref<4x16x20xf32, #tpu.memory_space<vmem>>, vector<4x16x1xf32>,
    %7 = vector.extract_strided_slice %1 {offsets = [0, 0, 1], sizes = [4, 16, 1], strides = [1, 1, 1]} : vector<4x16x16xf32> to vector<4x16x1xf32>
    %c0_10 = arith.constant 0 : index
    %c0_11 = arith.constant 0 : index
    %c1 = arith.constant 1 : index
    %8 = vector.load %arg7[%c0_10, %c0_11, %c1] : memref<4x16x20xf32, #tpu.memory_space<vmem>>, vector<4x16x1xf32>
    tpu.vector_store %arg7[%c0_10, %c0_11, %c1], %7 {strides = array<i32>} : memref<4x16x20xf32, #tpu.memory_space<vmem>>, vector<4x16x1xf32>,
    %9 = vector.extract_strided_slice %1 {offsets = [0, 0, 13], sizes = [4, 16, 1], strides = [1, 1, 1]} : vector<4x16x16xf32> to vector<4x16x1xf32>
    %c0_12 = arith.constant 0 : index
    %c0_13 = arith.constant 0 : index
    %c19 = arith.constant 19 : index
    %10 = vector.load %arg7[%c0_12, %c0_13, %c19] : memref<4x16x20xf32, #tpu.memory_space<vmem>>, vector<4x16x1xf32>
    tpu.vector_store %arg7[%c0_12, %c0_13, %c19], %9 {strides = array<i32>} : memref<4x16x20xf32, #tpu.memory_space<vmem>>, vector<4x16x1xf32>,
    %c0_14 = arith.constant 0 : index
    %c0_15 = arith.constant 0 : index
    %c0_16 = arith.constant 0 : index
    %11 = vector.load %arg7[%c0_14, %c0_15, %c0_16] : memref<4x16x20xf32, #tpu.memory_space<vmem>>, vector<4x16x16xf32>
    %cst = arith.constant 0.054488685 : f32
    %12 = vector.broadcast %cst : f32 to vector<4x16x16xf32>
    %13 = arith.mulf %12, %11 : vector<4x16x16xf32>
    %c0_17 = arith.constant 0 : index
    %c0_18 = arith.constant 0 : index
    %c1_19 = arith.constant 1 : index
    %14 = vector.load %arg7[%c0_17, %c0_18, %c1_19] : memref<4x16x20xf32, #tpu.memory_space<vmem>>, vector<4x16x16xf32>
    %cst_20 = arith.constant 0.244201347 : f32
    %15 = vector.broadcast %cst_20 : f32 to vector<4x16x16xf32>
    %16 = arith.mulf %15, %14 : vector<4x16x16xf32>
    %17 = arith.addf %13, %16 : vector<4x16x16xf32>
    %c0_21 = arith.constant 0 : index
    %c0_22 = arith.constant 0 : index
    %c2_23 = arith.constant 2 : index
    %18 = vector.load %arg7[%c0_21, %c0_22, %c2_23] : memref<4x16x20xf32, #tpu.memory_space<vmem>>, vector<4x16x16xf32>
    %cst_24 = arith.constant 0.402619958 : f32
    %19 = vector.broadcast %cst_24 : f32 to vector<4x16x16xf32>
    %20 = arith.mulf %19, %18 : vector<4x16x16xf32>
    %21 = arith.addf %17, %20 : vector<4x16x16xf32>
    %c0_25 = arith.constant 0 : index
    %c0_26 = arith.constant 0 : index
    %c3 = arith.constant 3 : index
    %22 = vector.load %arg7[%c0_25, %c0_26, %c3] : memref<4x16x20xf32, #tpu.memory_space<vmem>>, vector<4x16x16xf32>
    %cst_27 = arith.constant 0.244201347 : f32
    %23 = vector.broadcast %cst_27 : f32 to vector<4x16x16xf32>
    %24 = arith.mulf %23, %22 : vector<4x16x16xf32>
    %25 = arith.addf %21, %24 : vector<4x16x16xf32>
    %c0_28 = arith.constant 0 : index
    %c0_29 = arith.constant 0 : index
    %c4 = arith.constant 4 : index
    %26 = vector.load %arg7[%c0_28, %c0_29, %c4] : memref<4x16x20xf32, #tpu.memory_space<vmem>>, vector<4x16x16xf32>
    %cst_30 = arith.constant 0.054488685 : f32
    %27 = vector.broadcast %cst_30 : f32 to vector<4x16x16xf32>
    %28 = arith.mulf %27, %26 : vector<4x16x16xf32>
    %29 = arith.addf %25, %28 : vector<4x16x16xf32>
    %c0_31 = arith.constant 0 : index
    %c2_32 = arith.constant 2 : index
    %c0_33 = arith.constant 0 : index
    %30 = vector.load %arg8[%c0_31, %c2_32, %c0_33] : memref<4x20x16xf32, #tpu.memory_space<vmem>>, vector<4x16x16xf32>
    tpu.vector_store %arg8[%c0_31, %c2_32, %c0_33], %29 {strides = array<i32>} : memref<4x20x16xf32, #tpu.memory_space<vmem>>, vector<4x16x16xf32>,
    %31 = vector.extract_strided_slice %29 {offsets = [0, 2, 0], sizes = [4, 1, 16], strides = [1, 1, 1]} : vector<4x16x16xf32> to vector<4x1x16xf32>
    %c0_34 = arith.constant 0 : index
    %c0_35 = arith.constant 0 : index
    %c0_36 = arith.constant 0 : index
    %32 = vector.load %arg8[%c0_34, %c0_35, %c0_36] : memref<4x20x16xf32, #tpu.memory_space<vmem>>, vector<4x1x16xf32>
    tpu.vector_store %arg8[%c0_34, %c0_35, %c0_36], %31 {strides = array<i32>} : memref<4x20x16xf32, #tpu.memory_space<vmem>>, vector<4x1x16xf32>,
    %33 = vector.extract_strided_slice %29 {offsets = [0, 14, 0], sizes = [4, 1, 16], strides = [1, 1, 1]} : vector<4x16x16xf32> to vector<4x1x16xf32>
    %c0_37 = arith.constant 0 : index
    %c18_38 = arith.constant 18 : index
    %c0_39 = arith.constant 0 : index
    %34 = vector.load %arg8[%c0_37, %c18_38, %c0_39] : memref<4x20x16xf32, #tpu.memory_space<vmem>>, vector<4x1x16xf32>
    tpu.vector_store %arg8[%c0_37, %c18_38, %c0_39], %33 {strides = array<i32>} : memref<4x20x16xf32, #tpu.memory_space<vmem>>, vector<4x1x16xf32>,
    %35 = vector.extract_strided_slice %29 {offsets = [0, 1, 0], sizes = [4, 1, 16], strides = [1, 1, 1]} : vector<4x16x16xf32> to vector<4x1x16xf32>
    %c0_40 = arith.constant 0 : index
    %c1_41 = arith.constant 1 : index
    %c0_42 = arith.constant 0 : index
    %36 = vector.load %arg8[%c0_40, %c1_41, %c0_42] : memref<4x20x16xf32, #tpu.memory_space<vmem>>, vector<4x1x16xf32>
    tpu.vector_store %arg8[%c0_40, %c1_41, %c0_42], %35 {strides = array<i32>} : memref<4x20x16xf32, #tpu.memory_space<vmem>>, vector<4x1x16xf32>,
    %37 = vector.extract_strided_slice %29 {offsets = [0, 13, 0], sizes = [4, 1, 16], strides = [1, 1, 1]} : vector<4x16x16xf32> to vector<4x1x16xf32>
    %c0_43 = arith.constant 0 : index
    %c19_44 = arith.constant 19 : index
    %c0_45 = arith.constant 0 : index
    %38 = vector.load %arg8[%c0_43, %c19_44, %c0_45] : memref<4x20x16xf32, #tpu.memory_space<vmem>>, vector<4x1x16xf32>
    tpu.vector_store %arg8[%c0_43, %c19_44, %c0_45], %37 {strides = array<i32>} : memref<4x20x16xf32, #tpu.memory_space<vmem>>, vector<4x1x16xf32>,
    %c0_46 = arith.constant 0 : index
    %c0_47 = arith.constant 0 : index
    %c0_48 = arith.constant 0 : index
    %39 = vector.load %arg8[%c0_46, %c0_47, %c0_48] : memref<4x20x16xf32, #tpu.memory_space<vmem>>, vector<4x16x16xf32>
    %cst_49 = arith.constant 0.054488685 : f32
    %40 = vector.broadcast %cst_49 : f32 to vector<4x16x16xf32>
    %41 = arith.mulf %40, %39 : vector<4x16x16xf32>
    %c0_50 = arith.constant 0 : index
    %c1_51 = arith.constant 1 : index
    %c0_52 = arith.constant 0 : index
    %42 = vector.load %arg8[%c0_50, %c1_51, %c0_52] : memref<4x20x16xf32, #tpu.memory_space<vmem>>, vector<4x16x16xf32>
    %cst_53 = arith.constant 0.244201347 : f32
    %43 = vector.broadcast %cst_53 : f32 to vector<4x16x16xf32>
    %44 = arith.mulf %43, %42 : vector<4x16x16xf32>
    %45 = arith.addf %41, %44 : vector<4x16x16xf32>
    %c0_54 = arith.constant 0 : index
    %c2_55 = arith.constant 2 : index
    %c0_56 = arith.constant 0 : index
    %46 = vector.load %arg8[%c0_54, %c2_55, %c0_56] : memref<4x20x16xf32, #tpu.memory_space<vmem>>, vector<4x16x16xf32>
    %cst_57 = arith.constant 0.402619958 : f32
    %47 = vector.broadcast %cst_57 : f32 to vector<4x16x16xf32>
    %48 = arith.mulf %47, %46 : vector<4x16x16xf32>
    %49 = arith.addf %45, %48 : vector<4x16x16xf32>
    %c0_58 = arith.constant 0 : index
    %c3_59 = arith.constant 3 : index
    %c0_60 = arith.constant 0 : index
    %50 = vector.load %arg8[%c0_58, %c3_59, %c0_60] : memref<4x20x16xf32, #tpu.memory_space<vmem>>, vector<4x16x16xf32>
    %cst_61 = arith.constant 0.244201347 : f32
    %51 = vector.broadcast %cst_61 : f32 to vector<4x16x16xf32>
    %52 = arith.mulf %51, %50 : vector<4x16x16xf32>
    %53 = arith.addf %49, %52 : vector<4x16x16xf32>
    %c0_62 = arith.constant 0 : index
    %c4_63 = arith.constant 4 : index
    %c0_64 = arith.constant 0 : index
    %54 = vector.load %arg8[%c0_62, %c4_63, %c0_64] : memref<4x20x16xf32, #tpu.memory_space<vmem>>, vector<4x16x16xf32>
    %cst_65 = arith.constant 0.054488685 : f32
    %55 = vector.broadcast %cst_65 : f32 to vector<4x16x16xf32>
    %56 = arith.mulf %55, %54 : vector<4x16x16xf32>
    %57 = arith.addf %53, %56 : vector<4x16x16xf32>
    %58 = arith.index_cast %arg0 : i32 to index
    %59 = memref.load %arg1[%58] : memref<2xf32, #tpu.memory_space<smem>>
    %c0_66 = arith.constant 0 : index
    %c0_67 = arith.constant 0 : index
    %c0_68 = arith.constant 0 : index
    %c0_69 = arith.constant 0 : index
    %60 = vector.load %arg2[%c0_66, %c0_67, %c0_68, %c0_69] : memref<1x4x16x16xf32, #tpu.memory_space<vmem>>, vector<1x4x16x16xf32>
    %61 = vector.shape_cast %60 : vector<1x4x16x16xf32> to vector<4x16x16xf32>
    %62 = vector.broadcast %59 : f32 to vector<4x16x16xf32>
    %63 = arith.mulf %62, %61 : vector<4x16x16xf32>
    %cst_70 = arith.constant 1.000000e+00 : f32
    %64 = arith.subf %cst_70, %59 : f32
    %65 = vector.broadcast %64 : f32 to vector<4x16x16xf32>
    %66 = arith.mulf %65, %57 : vector<4x16x16xf32>
    %67 = arith.addf %63, %66 : vector<4x16x16xf32>
    %c0_71 = arith.constant 0 : index
    %c0_72 = arith.constant 0 : index
    %c0_73 = arith.constant 0 : index
    %c0_74 = arith.constant 0 : index
    %68 = vector.load %arg5[%c0_71, %c0_72, %c0_73, %c0_74] : memref<1x4x16x16xf32, #tpu.memory_space<vmem>>, vector<1x4x16x16xf32>
    %69 = vector.shape_cast %68 : vector<1x4x16x16xf32> to vector<4x16x16xf32>
    %70 = vector.shape_cast %67 : vector<4x16x16xf32> to vector<1x4x16x16xf32>
    tpu.vector_store %arg5[%c0_71, %c0_72, %c0_73, %c0_74], %70 {strides = array<i32>} : memref<1x4x16x16xf32, #tpu.memory_space<vmem>>, vector<1x4x16x16xf32>,
    %c0_75 = arith.constant 0 : index
    %c0_76 = arith.constant 0 : index
    %c0_77 = arith.constant 0 : index
    %c0_78 = arith.constant 0 : index
    %71 = vector.load %arg4[%c0_75, %c0_76, %c0_77, %c0_78] : memref<1x4x16x16xf32, #tpu.memory_space<vmem>>, vector<1x4x16x16xf32>
    %72 = vector.shape_cast %71 : vector<1x4x16x16xf32> to vector<4x16x16xf32>
    %73 = arith.subf %1, %72 : vector<4x16x16xf32>
    %74 = arith.mulf %73, %73 : vector<4x16x16xf32>
    %75 = vector.shape_cast %74 : vector<4x16x16xf32> to vector<1x4x16x16xf32>
    %cst_79 = arith.constant dense<0.000000e+00> : vector<1xf32>
    %76 = vector.multi_reduction <add>, %75, %cst_79 [1, 2, 3] : vector<1x4x16x16xf32> to vector<1xf32>
    %77 = vector.shape_cast %76 : vector<1xf32> to vector<1x1x1x1xf32>
    %78 = vector.extract %77[0, 0, 0, 0] : f32 from vector<1x1x1x1xf32>
    %cst_80 = arith.constant 9.765625E-4 : f32
    %79 = arith.mulf %78, %cst_80 : f32
    %80 = vector.broadcast %79 : f32 to vector<8x128xf32>
    %c0_81 = arith.constant 0 : index
    %c0_82 = arith.constant 0 : index
    %c0_83 = arith.constant 0 : index
    %81 = vector.load %arg6[%c0_81, %c0_82, %c0_83] : memref<1x8x128xf32, #tpu.memory_space<vmem>>, vector<1x8x128xf32>
    %82 = vector.shape_cast %81 : vector<1x8x128xf32> to vector<8x128xf32>
    %83 = vector.shape_cast %80 : vector<8x128xf32> to vector<1x8x128xf32>
    tpu.vector_store %arg6[%c0_81, %c0_82, %c0_83], %83 {strides = array<i32>} : memref<1x8x128xf32, #tpu.memory_space<vmem>>, vector<1x8x128xf32>,
    return
  }
  func.func @transform_0(%arg0: i32) -> i32 {
    %c0_i32 = arith.constant 0 : i32
    %c0_i32_0 = arith.constant 0 : i32
    return %c0_i32 : i32
  }
  func.func @transform_1(%arg0: i32) -> (i32, i32, i32, i32) {
    %c0_i32 = arith.constant 0 : i32
    %c0_i32_0 = arith.constant 0 : i32
    %c0_i32_1 = arith.constant 0 : i32
    %c0_i32_2 = arith.constant 0 : i32
    return %arg0, %c0_i32, %c0_i32_0, %c0_i32_1 : i32, i32, i32, i32
  }
  func.func @transform_2(%arg0: i32) -> (i32, i32, i32, i32) {
    %c0_i32 = arith.constant 0 : i32
    %c0_i32_0 = arith.constant 0 : i32
    %c0_i32_1 = arith.constant 0 : i32
    %c0_i32_2 = arith.constant 0 : i32
    return %arg0, %c0_i32, %c0_i32_0, %c0_i32_1 : i32, i32, i32, i32
  }
  func.func @transform_3(%arg0: i32) -> (i32, i32, i32, i32) {
    %c0_i32 = arith.constant 0 : i32
    %c0_i32_0 = arith.constant 0 : i32
    %c0_i32_1 = arith.constant 0 : i32
    %c0_i32_2 = arith.constant 0 : i32
    return %arg0, %c0_i32, %c0_i32_0, %c0_i32_1 : i32, i32, i32, i32
  }
  func.func @transform_4(%arg0: i32) -> (i32, i32, i32, i32) {
    %c0_i32 = arith.constant 0 : i32
    %c0_i32_0 = arith.constant 0 : i32
    %c0_i32_1 = arith.constant 0 : i32
    %c0_i32_2 = arith.constant 0 : i32
    return %arg0, %c0_i32, %c0_i32_0, %c0_i32_1 : i32, i32, i32, i32
  }
  func.func @transform_5(%arg0: i32) -> (i32, i32, i32) {
    %c0_i32 = arith.constant 0 : i32
    %c0_i32_0 = arith.constant 0 : i32
    %c0_i32_1 = arith.constant 0 : i32
    return %arg0, %c0_i32, %c0_i32_0 : i32, i32, i32
  }
}

</mosaic_0001>

<llo_original>
// kernel: tpu_custom_call.1
$region0: #{tpu_custom_call.1}
  #allocation0 [shape = 'u32[]', space=smem, size = 0x4, offset = 0x4, fixed_abs, tag = 'smem constant byte address 0x4 - core index']
  #allocation1 [shape = 'u32[144,128]{1,0:T(1,128)}', space=vmem, size = 0x12000, scoped, tag = 'internal scratch']
  #allocation2 [shape = 'f32[4,16,20]{2,1,0:T(8,128)}', space=vmem, size = 0x8000, scoped, tag = 'scratch operand']
  #allocation3 [shape = 'f32[4,20,16]{2,1,0:T(8,128)}', space=vmem, size = 0xc000, scoped, tag = 'scratch operand']
  %s0 = inlined_call_operand.hbm [shape: f32[2], index: 0, kind: input, shape index: {}]
  %s1 = inlined_call_operand.hbm [shape: f32[2,4,16,16], index: 1, kind: input, shape index: {}]
  %s2 = inlined_call_operand.hbm [shape: f32[2,4,16,16], index: 2, kind: input, shape index: {}]
  %s3 = inlined_call_operand.hbm [shape: f32[2,4,16,16], index: 3, kind: input, shape index: {}]
  %s4 = inlined_call_operand.hbm [shape: f32[2,4,16,16], index: 4, kind: output, shape index: {0}]
  %s5 = inlined_call_operand.hbm [shape: f32[2,8,128], index: 5, kind: output, shape index: {1}]
  %6 = xla_tuple %s4, %s5
  %s7 = sld [smem:[#allocation0]]
  $region73: #{tpu_custom_call.1} parent=0
    _
  %s9 = ssub.s32 1, %s7
  %s10 = scalar_select 0, %s9, %s7
  $region1: #{tpu_custom_call.1} parent=0
    #allocation4 [shape = 'u8[512]{0}', space=smem, size = 0x200, scoped, tag = 'input window, operand 0, single buffered']
    #allocation5 [shape = 's32[2]{0}', space=sflag, size = 0x8, scoped, tag = 'scoped memory for tpu_custom_call.1']
    #allocation6 [shape = 's32[2]{0}', space=sflag, size = 0x8, scoped, tag = 'scoped memory for tpu_custom_call.1']
    #allocation7 [shape = 's32[2]{0}', space=sflag, size = 0x8, scoped, tag = 'scoped memory for tpu_custom_call.1']
    #allocation8 [shape = 'u8[65536]{0}', space=vmem, size = 0x10000, scoped, tag = 'input window, operand 1']
    #allocation9 [shape = 'u8[65536]{0}', space=vmem, size = 0x10000, scoped, tag = 'input window, operand 2']
    #allocation10 [shape = 's32[2]{0}', space=sflag, size = 0x8, scoped, tag = 'scoped memory for tpu_custom_call.1']
    #allocation11 [shape = 'u8[65536]{0}', space=vmem, size = 0x10000, scoped, tag = 'input window, operand 3']
    #allocation12 [shape = 'u8[65536]{0}', space=vmem, size = 0x10000, scoped, tag = 'output window, operand 0']
    #allocation13 [shape = 'u8[8192]{0}', space=vmem, size = 0x2000, scoped, tag = 'output window, operand 1']
    #allocation14 [shape = 's32[2]{0}', space=sflag, size = 0x8, scoped, tag = 'scoped memory for tpu_custom_call.1']
    %11 = vsyncpa [#allocation7], 0
    %12 = vsyncpa [#allocation5], 0
    %s13 = scalar_lea.sflag [#allocation5], 1
    %14 = vsyncpa %s13, 0
    %15 = vsyncpa [#allocation10], 0
    %s16 = scalar_lea.sflag [#allocation10], 1
    %17 = vsyncpa %s16, 0
    %18 = vsyncpa [#allocation6], 0
    %s19 = scalar_lea.sflag [#allocation6], 1
    %20 = vsyncpa %s19, 0
    %21 = vsyncpa [#allocation14], 0
    %s22 = scalar_lea.sflag [#allocation14], 1
    %23 = vsyncpa %s22, 0
    loop: start=0, step=1, limit=4
    $region2: #{tpu_custom_call.1} parent=1 // loop_pre_header
      _
    $region3: #{tpu_custom_call.1} parent=1 // loop_header
      %s25 = sphi 0, %s29
      %p26 = scmp.ge.s32.totalorder %s25, 4
      %s33 = sphi 0, %s33
      %s35 = sphi 0, %s33
      %s36 = sphi 0, %s35
      %s50 = sphi 0, %s36
      %s56 = sphi 0, %s58
      %s59 = sphi 0, %s56
      %s60 = sphi 0, %s59
      %s76 = sphi 0, %s60
      %s82 = sphi 0, %s84
      %s85 = sphi 0, %s82
      %s86 = sphi 0, %s85
      %s102 = sphi 0, %s86
      %s108 = sphi 0, %s110
      %s111 = sphi 0, %s108
      %s112 = sphi 0, %s111
      %s128 = sphi 0, %s112
      %s134 = sphi 0, %s136
      %s137 = sphi 0, %s134
      %s138 = sphi 0, %s137
      %s154 = sphi 0, %s138
      %s160 = sphi 0, %s162
      %s163 = sphi 0, %s160
      %s164 = sphi 0, %s163
      %s180 = sphi 0, %s164
    $region4: #{tpu_custom_call.1} parent=1 // loop_header_branch
      %28 = sbr.rel (%p26) target = $region8
    $region5: #{tpu_custom_call.1} parent=1 // loop_body
      %s30 = ssub.s32 %s25, 1
      %s31 = ssub.s32 %s25, 2
      %s32 = sadd.s32 %s25, 1
      %s34 = sadd.s32 %s33, 1
      %p37 = scmp.eq.s32.totalorder %s25, 1
      %p38 = scmp.ne.s32.totalorder %s33, %s35
      %p39 = scmp.eq.s32.totalorder %s25, 0
      %p40 = por %p38, %p39
      %p41 = scmp.ne.s32.totalorder %s33, %s35
      %p42 = scmp.eq.s32.totalorder %s30, 1
      %p43 = por %p41, %p42
      %p44 = scmp.ne.s32.totalorder %s35, %s36
      %p45 = scmp.eq.s32.totalorder %s30, 0
      %p46 = por %p44, %p45
      %p47 = scmp.ne.s32.totalorder %s35, %s36
      %p48 = scmp.eq.s32.totalorder %s31, 1
      %p49 = por %p47, %p48
      %p51 = scmp.ne.s32.totalorder %s36, %s50
      %p52 = scmp.eq.s32.totalorder %s31, 0
      %p53 = por %p51, %p52
      %s54 = ssub.s32 %s25, %s32
      %p55 = scmp.eq.s32.totalorder %s54, 0
      %s57 = sadd.s32 %s56, 1
      %s58 = scalar_select %p55, %s56, %s57
      %p61 = pneg %p55
      %p62 = scmp.eq.s32.totalorder %s25, 1
      %p63 = por %p61, %p62
      %p64 = scmp.ne.s32.totalorder %s56, %s59
      %p65 = scmp.eq.s32.totalorder %s25, 0
      %p66 = por %p64, %p65
      %p67 = scmp.ne.s32.totalorder %s56, %s59
      %p68 = scmp.eq.s32.totalorder %s30, 1
      %p69 = por %p67, %p68
      %p70 = scmp.ne.s32.totalorder %s59, %s60
      %p71 = scmp.eq.s32.totalorder %s30, 0
      %p72 = por %p70, %p71
      %p73 = scmp.ne.s32.totalorder %s59, %s60
      %p74 = scmp.eq.s32.totalorder %s31, 1
      %p75 = por %p73, %p74
      %p77 = scmp.ne.s32.totalorder %s60, %s76
      %p78 = scmp.eq.s32.totalorder %s31, 0
      %p79 = por %p77, %p78
      %s80 = ssub.s32 %s25, %s32
      %p81 = scmp.eq.s32.totalorder %s80, 0
      %s83 = sadd.s32 %s82, 1
      %s84 = scalar_select %p81, %s82, %s83
      %p87 = pneg %p81
      %p88 = scmp.eq.s32.totalorder %s25, 1
      %p89 = por %p87, %p88
      %p90 = scmp.ne.s32.totalorder %s82, %s85
      %p91 = scmp.eq.s32.totalorder %s25, 0
      %p92 = por %p90, %p91
      %p93 = scmp.ne.s32.totalorder %s82, %s85
      %p94 = scmp.eq.s32.totalorder %s30, 1
      %p95 = por %p93, %p94
      %p96 = scmp.ne.s32.totalorder %s85, %s86
      %p97 = scmp.eq.s32.totalorder %s30, 0
      %p98 = por %p96, %p97
      %p99 = scmp.ne.s32.totalorder %s85, %s86
      %p100 = scmp.eq.s32.totalorder %s31, 1
      %p101 = por %p99, %p100
      %p103 = scmp.ne.s32.totalorder %s86, %s102
      %p104 = scmp.eq.s32.totalorder %s31, 0
      %p105 = por %p103, %p104
      %s106 = ssub.s32 %s25, %s32
      %p107 = scmp.eq.s32.totalorder %s106, 0
      %s109 = sadd.s32 %s108, 1
      %s110 = scalar_select %p107, %s108, %s109
      %p113 = pneg %p107
      %p114 = scmp.eq.s32.totalorder %s25, 1
      %p115 = por %p113, %p114
      %p116 = scmp.ne.s32.totalorder %s108, %s111
      %p117 = scmp.eq.s32.totalorder %s25, 0
      %p118 = por %p116, %p117
      %p119 = scmp.ne.s32.totalorder %s108, %s111
      %p120 = scmp.eq.s32.totalorder %s30, 1
      %p121 = por %p119, %p120
      %p122 = scmp.ne.s32.totalorder %s111, %s112
      %p123 = scmp.eq.s32.totalorder %s30, 0
      %p124 = por %p122, %p123
      %p125 = scmp.ne.s32.totalorder %s111, %s112
      %p126 = scmp.eq.s32.totalorder %s31, 1
      %p127 = por %p125, %p126
      %p129 = scmp.ne.s32.totalorder %s112, %s128
      %p130 = scmp.eq.s32.totalorder %s31, 0
      %p131 = por %p129, %p130
      %s132 = ssub.s32 %s25, %s32
      %p133 = scmp.eq.s32.totalorder %s132, 0
      %s135 = sadd.s32 %s134, 1
      %s136 = scalar_select %p133, %s134, %s135
      %p139 = pneg %p133
      %p140 = scmp.eq.s32.totalorder %s25, 1
      %p141 = por %p139, %p140
      %p142 = scmp.ne.s32.totalorder %s134, %s137
      %p143 = scmp.eq.s32.totalorder %s25, 0
      %p144 = por %p142, %p143
      %p145 = scmp.ne.s32.totalorder %s134, %s137
      %p146 = scmp.eq.s32.totalorder %s30, 1
      %p147 = por %p145, %p146
      %p148 = scmp.ne.s32.totalorder %s137, %s138
      %p149 = scmp.eq.s32.totalorder %s30, 0
      %p150 = por %p148, %p149
      %p151 = scmp.ne.s32.totalorder %s137, %s138
      %p152 = scmp.eq.s32.totalorder %s31, 1
      %p153 = por %p151, %p152
      %p155 = scmp.ne.s32.totalorder %s138, %s154
      %p156 = scmp.eq.s32.totalorder %s31, 0
      %p157 = por %p155, %p156
      %s158 = ssub.s32 %s25, %s32
      %p159 = scmp.eq.s32.totalorder %s158, 0
      %s161 = sadd.s32 %s160, 1
      %s162 = scalar_select %p159, %s160, %s161
      %p165 = pneg %p159
      %p166 = scmp.eq.s32.totalorder %s25, 1
      %p167 = por %p165, %p166
      %p168 = scmp.ne.s32.totalorder %s160, %s163
      %p169 = scmp.eq.s32.totalorder %s25, 0
      %p170 = por %p168, %p169
      %p171 = scmp.ne.s32.totalorder %s160, %s163
      %p172 = scmp.eq.s32.totalorder %s30, 1
      %p173 = por %p171, %p172
      %p174 = scmp.ne.s32.totalorder %s163, %s164
      %p175 = scmp.eq.s32.totalorder %s30, 0
      %p176 = por %p174, %p175
      %p177 = scmp.ne.s32.totalorder %s163, %s164
      %p178 = scmp.eq.s32.totalorder %s31, 1
      %p179 = por %p177, %p178
      %p181 = scmp.ne.s32.totalorder %s164, %s180
      %p182 = scmp.eq.s32.totalorder %s31, 0
      %p183 = por %p181, %p182
      %p184 = scmp.le.s32.totalorder 1, %s25
      %p185 = scmp.lt.s32.totalorder %s25, 3
      %p186 = pnand %p184, %p185
      %p187 = pneg %p186
      // Predicated region
      $region9: #{tpu_custom_call.1} parent=5 // pred_check
        _
      $region10: #{tpu_custom_call.1} parent=5 // pred_check_branch
        %189 = sbr.rel (%p186) target = $region12
      $region11: #{tpu_custom_call.1} parent=5 // pred_region
        %s190 = ssub.s32 %s25, 1
        // Predicated region
        $region13: #{tpu_custom_call.1} parent=11 // pred_check
          %p191 = pneg %p46
        $region14: #{tpu_custom_call.1} parent=11 // pred_check_branch
          %193 = sbr.rel (%p191) target = $region16
        $region15: #{tpu_custom_call.1} parent=11 // pred_region
          %s195 = ssub.s32 16, 16
          %196 = vsyncadd [#allocation7], %s195
          %199 = dma.hbm_to_smem %s0, 16, [#allocation4], [#allocation7]
        $region16: #{tpu_custom_call.1} parent=11 // pred_fallthru
          _
      $region12: #{tpu_custom_call.1} parent=5 // pred_fallthru
        _
      %p200 = scmp.lt.s32.totalorder %s25, 2
      // Predicated region
      $region17: #{tpu_custom_call.1} parent=5 // pred_check
        %p201 = pneg %p200
      $region18: #{tpu_custom_call.1} parent=5 // pred_check_branch
        %203 = sbr.rel (%p201) target = $region20
      $region19: #{tpu_custom_call.1} parent=5 // pred_region
        // Predicated region
        $region21: #{tpu_custom_call.1} parent=19 // pred_check
          %p204 = pneg %p66
        $region22: #{tpu_custom_call.1} parent=19 // pred_check_branch
          %206 = sbr.rel (%p204) target = $region24
        $region23: #{tpu_custom_call.1} parent=19 // pred_region
          %s207 = sand.u32 %s56, 1
          %s208 = scalar_lea.sflag [#allocation5], %s207
          %s209 = sand.u32 %s56, 1
          %s210 = smul.addr %s209, 64
          %s211 = scalar_lea.vmem [#allocation8], %s210
          %s213 = ssub.s32 1024, 1024
          %214 = vsyncadd %s208, %s213
          %s215 = smul.addr %s25, 8
          %s216 = smul.addr %s215, 128
          %s217 = scalar_lea.hbm %s1, %s216
          %s218 = sshll.u32 %s211, 4
          %s219 = int_to_ptr.vmem [resolvable:$true] %s218
          %224 = dma.hbm_to_vmem [thread:$0]  %s217, 1024, %s219, %s208, 128, 128, 8
        $region24: #{tpu_custom_call.1} parent=19 // pred_fallthru
          _
        // Predicated region
        $region25: #{tpu_custom_call.1} parent=19 // pred_check
          %p225 = pneg %p92
        $region26: #{tpu_custom_call.1} parent=19 // pred_check_branch
          %227 = sbr.rel (%p225) target = $region28
        $region27: #{tpu_custom_call.1} parent=19 // pred_region
          %s228 = sand.u32 %s25, 1
          %s229 = scalar_lea.sflag [#allocation10], %s228
          %s230 = sand.u32 %s82, 1
          %s231 = smul.addr %s230, 64
          %s232 = scalar_lea.vmem [#allocation9], %s231
          %s234 = ssub.s32 1024, 1024
          %235 = vsyncadd %s229, %s234
          %s236 = smul.addr %s25, 8
          %s237 = smul.addr %s236, 128
          %s238 = scalar_lea.hbm %s2, %s237
          %s239 = sshll.u32 %s232, 4
          %s240 = int_to_ptr.vmem [resolvable:$true] %s239
          %245 = dma.hbm_to_vmem [thread:$0]  %s238, 1024, %s240, %s229, 128, 128, 8
        $region28: #{tpu_custom_call.1} parent=19 // pred_fallthru
          _
        // Predicated region
        $region29: #{tpu_custom_call.1} parent=19 // pred_check
          %p246 = pneg %p118
        $region30: #{tpu_custom_call.1} parent=19 // pred_check_branch
          %248 = sbr.rel (%p246) target = $region32
        $region31: #{tpu_custom_call.1} parent=19 // pred_region
          %s249 = sand.u32 %s25, 1
          %s250 = scalar_lea.sflag [#allocation10], %s249
          %s251 = sand.u32 %s108, 1
          %s252 = smul.addr %s251, 64
          %s253 = scalar_lea.vmem [#allocation11], %s252
          %s255 = ssub.s32 1024, 1024
          %256 = vsyncadd %s250, %s255
          %s257 = smul.addr %s25, 8
          %s258 = smul.addr %s257, 128
          %s259 = scalar_lea.hbm %s3, %s258
          %s260 = sshll.u32 %s253, 4
          %s261 = int_to_ptr.vmem [resolvable:$true] %s260
          %266 = dma.hbm_to_vmem [thread:$0]  %s259, 1024, %s261, %s250, 128, 128, 8
        $region32: #{tpu_custom_call.1} parent=19 // pred_fallthru
          _
      $region20: #{tpu_custom_call.1} parent=5 // pred_fallthru
        _
      %p267 = scmp.le.s32.totalorder 1, %s25
      %p268 = scmp.lt.s32.totalorder %s25, 3
      %p269 = pnand %p267, %p268
      %p270 = pneg %p269
      // Predicated region
      $region33: #{tpu_custom_call.1} parent=5 // pred_check
        _
      $region34: #{tpu_custom_call.1} parent=5 // pred_check_branch
        %272 = sbr.rel (%p269) target = $region36
      $region35: #{tpu_custom_call.1} parent=5 // pred_region
        %s273 = ssub.s32 %s25, 1
        // Predicated region
        $region37: #{tpu_custom_call.1} parent=35 // pred_check
          %p274 = pneg %p46
        $region38: #{tpu_custom_call.1} parent=35 // pred_check_branch
          %276 = sbr.rel (%p274) target = $region40
        $region39: #{tpu_custom_call.1} parent=35 // pred_region
          %277 = dma.done [#allocation7], 16
        $region40: #{tpu_custom_call.1} parent=35 // pred_fallthru
          _
        %s278 = sand.u32 %s59, 1
        %s279 = scalar_lea.sflag [#allocation5], %s278
        %s280 = sand.u32 %s59, 1
        %s281 = smul.addr %s280, 64
        %s282 = scalar_lea.vmem [#allocation8], %s281
        // Predicated region
        $region41: #{tpu_custom_call.1} parent=35 // pred_check
          %p283 = pneg %p72
        $region42: #{tpu_custom_call.1} parent=35 // pred_check_branch
          %285 = sbr.rel (%p283) target = $region44
        $region43: #{tpu_custom_call.1} parent=35 // pred_region
          %286 = dma.done %s279, 1024
        $region44: #{tpu_custom_call.1} parent=35 // pred_fallthru
          _
        %s287 = sand.u32 %s30, 1
        %s288 = scalar_lea.sflag [#allocation10], %s287
        %s289 = sand.u32 %s85, 1
        %s290 = smul.addr %s289, 64
        %s291 = scalar_lea.vmem [#allocation9], %s290
        // Predicated region
        $region45: #{tpu_custom_call.1} parent=35 // pred_check
          %p292 = pneg %p98
        $region46: #{tpu_custom_call.1} parent=35 // pred_check_branch
          %294 = sbr.rel (%p292) target = $region48
        $region47: #{tpu_custom_call.1} parent=35 // pred_region
          %295 = dma.done %s288, 1024
        $region48: #{tpu_custom_call.1} parent=35 // pred_fallthru
          _
        %s296 = sand.u32 %s30, 1
        %s297 = scalar_lea.sflag [#allocation10], %s296
        %s298 = sand.u32 %s111, 1
        %s299 = smul.addr %s298, 64
        %s300 = scalar_lea.vmem [#allocation11], %s299
        // Predicated region
        $region49: #{tpu_custom_call.1} parent=35 // pred_check
          %p301 = pneg %p124
        $region50: #{tpu_custom_call.1} parent=35 // pred_check_branch
          %303 = sbr.rel (%p301) target = $region52
        $region51: #{tpu_custom_call.1} parent=35 // pred_region
          %304 = dma.done %s297, 1024
        $region52: #{tpu_custom_call.1} parent=35 // pred_fallthru
          _
        %305 = sfence
        %p306 = pneg %p46
        %p307 = pneg %p43
        %s308 = sand.u32 %s59, 1
        %s309 = scalar_lea.sflag [#allocation5], %s308
        %s310 = sand.u32 %s59, 1
        %s311 = smul.addr %s310, 64
        %s312 = scalar_lea.vmem [#allocation8], %s311
        %p313 = pneg %p72
        %p314 = pneg %p69
        %s315 = sand.u32 %s30, 1
        %s316 = scalar_lea.sflag [#allocation10], %s315
        %s317 = sand.u32 %s85, 1
        %s318 = smul.addr %s317, 64
        %s319 = scalar_lea.vmem [#allocation9], %s318
        %p320 = pneg %p98
        %p321 = pneg %p95
        %s322 = sand.u32 %s30, 1
        %s323 = scalar_lea.sflag [#allocation10], %s322
        %s324 = sand.u32 %s111, 1
        %s325 = smul.addr %s324, 64
        %s326 = scalar_lea.vmem [#allocation11], %s325
        %p327 = pneg %p124
        %p328 = pneg %p121
        %p329 = pneg %p150
        %p330 = pneg %p147
        %s331 = sand.u32 %s137, 1
        %s332 = scalar_lea.sflag [#allocation6], %s331
        %s333 = sand.u32 %s137, 1
        %s334 = smul.addr %s333, 64
        %s335 = scalar_lea.vmem [#allocation12], %s334
        %p336 = pneg %p176
        %p337 = pneg %p173
        %s338 = sand.u32 %s163, 1
        %s339 = scalar_lea.sflag [#allocation14], %s338
        %s340 = sand.u32 %s163, 1
        %s341 = smul.addr %s340, 8
        %s342 = scalar_lea.vmem [#allocation13], %s341
        %v343 = vld [vmem:[%s291] sm:$0xff]
        %v344 = vld [vmem:[%s291 + $0x8] sm:$0xff]
        %v345 = vld [vmem:[%s291 + $0x10] sm:$0xff]
        %v346 = vld [vmem:[%s291 + $0x18] sm:$0xff]
        %v347 = vld [vmem:[%s291 + $0x20] sm:$0xff]
        %v348 = vld [vmem:[%s291 + $0x28] sm:$0xff]
        %v349 = vld [vmem:[%s291 + $0x30] sm:$0xff]
        %v350 = vld [vmem:[%s291 + $0x38] sm:$0xff]
        %359 = vrot.lane.b32.xlu0 %v343, 2
        %v360 = vpop.permute.xlu0 %359
        %361 = vrot.lane.b32.xlu0 %v344, 2
        %v362 = vpop.permute.xlu0 %361
        %363 = vrot.lane.b32.xlu0 %v345, 2
        %v364 = vpop.permute.xlu0 %363
        %365 = vrot.lane.b32.xlu0 %v346, 2
        %v366 = vpop.permute.xlu0 %365
        %367 = vrot.lane.b32.xlu0 %v347, 2
        %v368 = vpop.permute.xlu0 %367
        %369 = vrot.lane.b32.xlu0 %v348, 2
        %v370 = vpop.permute.xlu0 %369
        %371 = vrot.lane.b32.xlu0 %v349, 2
        %v372 = vpop.permute.xlu0 %371
        %373 = vrot.lane.b32.xlu0 %v350, 2
        %v374 = vpop.permute.xlu0 %373
        %vm383 = vcmask 146448
        %384 = vst.msk [vmem:[#allocation2] sm:$0xff] %vm383, %v360
        %385 = vst.msk [vmem:[#allocation2 + $0x8] sm:$0xff] %vm383, %v362
        %386 = vst.msk [vmem:[#allocation2 + $0x10] sm:$0xff] %vm383, %v364
        %387 = vst.msk [vmem:[#allocation2 + $0x18] sm:$0xff] %vm383, %v366
        %388 = vst.msk [vmem:[#allocation2 + $0x20] sm:$0xff] %vm383, %v368
        %389 = vst.msk [vmem:[#allocation2 + $0x28] sm:$0xff] %vm383, %v370
        %390 = vst.msk [vmem:[#allocation2 + $0x30] sm:$0xff] %vm383, %v372
        %391 = vst.msk [vmem:[#allocation2 + $0x38] sm:$0xff] %vm383, %v374
        %392 = vrot.lane.b32.xlu0 %v343, 126
        %v393 = vpop.permute.xlu0 %392
        %394 = vrot.lane.b32.xlu0 %v344, 126
        %v395 = vpop.permute.xlu0 %394
        %396 = vrot.lane.b32.xlu0 %v345, 126
        %v397 = vpop.permute.xlu0 %396
        %398 = vrot.lane.b32.xlu0 %v346, 126
        %v399 = vpop.permute.xlu0 %398
        %400 = vrot.lane.b32.xlu0 %v347, 126
        %v401 = vpop.permute.xlu0 %400
        %402 = vrot.lane.b32.xlu0 %v348, 126
        %v403 = vpop.permute.xlu0 %402
        %404 = vrot.lane.b32.xlu0 %v349, 126
        %v405 = vpop.permute.xlu0 %404
        %406 = vrot.lane.b32.xlu0 %v350, 126
        %v407 = vpop.permute.xlu0 %406
        %vm416 = vcmask 7168
        %417 = vst.msk [vmem:[#allocation2] sm:$0xff] %vm416, %v393
        %418 = vst.msk [vmem:[#allocation2 + $0x8] sm:$0xff] %vm416, %v395
        %419 = vst.msk [vmem:[#allocation2 + $0x10] sm:$0xff] %vm416, %v397
        %420 = vst.msk [vmem:[#allocation2 + $0x18] sm:$0xff] %vm416, %v399
        %421 = vst.msk [vmem:[#allocation2 + $0x20] sm:$0xff] %vm416, %v401
        %422 = vst.msk [vmem:[#allocation2 + $0x28] sm:$0xff] %vm416, %v403
        %423 = vst.msk [vmem:[#allocation2 + $0x30] sm:$0xff] %vm416, %v405
        %424 = vst.msk [vmem:[#allocation2 + $0x38] sm:$0xff] %vm416, %v407
        %425 = vrot.lane.b32.xlu0 %v343, 4
        %v426 = vpop.permute.xlu0 %425
        %427 = vrot.lane.b32.xlu0 %v344, 4
        %v428 = vpop.permute.xlu0 %427
        %429 = vrot.lane.b32.xlu0 %v345, 4
        %v430 = vpop.permute.xlu0 %429
        %431 = vrot.lane.b32.xlu0 %v346, 4
        %v432 = vpop.permute.xlu0 %431
        %433 = vrot.lane.b32.xlu0 %v347, 4
        %v434 = vpop.permute.xlu0 %433
        %435 = vrot.lane.b32.xlu0 %v348, 4
        %v436 = vpop.permute.xlu0 %435
        %437 = vrot.lane.b32.xlu0 %v349, 4
        %v438 = vpop.permute.xlu0 %437
        %439 = vrot.lane.b32.xlu0 %v350, 4
        %v440 = vpop.permute.xlu0 %439
        %vm449 = vcmask 154768
        %450 = vst.msk [vmem:[#allocation2] sm:$0xff] %vm449, %v426
        %451 = vst.msk [vmem:[#allocation2 + $0x8] sm:$0xff] %vm449, %v428
        %452 = vst.msk [vmem:[#allocation2 + $0x10] sm:$0xff] %vm449, %v430
        %453 = vst.msk [vmem:[#allocation2 + $0x18] sm:$0xff] %vm449, %v432
        %454 = vst.msk [vmem:[#allocation2 + $0x20] sm:$0xff] %vm449, %v434
        %455 = vst.msk [vmem:[#allocation2 + $0x28] sm:$0xff] %vm449, %v436
        %456 = vst.msk [vmem:[#allocation2 + $0x30] sm:$0xff] %vm449, %v438
        %457 = vst.msk [vmem:[#allocation2 + $0x38] sm:$0xff] %vm449, %v440
        %vm458 = vcmask 15368
        %459 = vst.msk [vmem:[#allocation2] sm:$0xff] %vm458, %v343
        %460 = vst.msk [vmem:[#allocation2 + $0x8] sm:$0xff] %vm458, %v344
        %461 = vst.msk [vmem:[#allocation2 + $0x10] sm:$0xff] %vm458, %v345
        %462 = vst.msk [vmem:[#allocation2 + $0x18] sm:$0xff] %vm458, %v346
        %463 = vst.msk [vmem:[#allocation2 + $0x20] sm:$0xff] %vm458, %v347
        %464 = vst.msk [vmem:[#allocation2 + $0x28] sm:$0xff] %vm458, %v348
        %465 = vst.msk [vmem:[#allocation2 + $0x30] sm:$0xff] %vm458, %v349
        %466 = vst.msk [vmem:[#allocation2 + $0x38] sm:$0xff] %vm458, %v350
        %467 = vrot.lane.b32.xlu0 %v343, 6
        %v468 = vpop.permute.xlu0 %467
        %469 = vrot.lane.b32.xlu0 %v344, 6
        %v470 = vpop.permute.xlu0 %469
        %471 = vrot.lane.b32.xlu0 %v345, 6
        %v472 = vpop.permute.xlu0 %471
        %473 = vrot.lane.b32.xlu0 %v346, 6
        %v474 = vpop.permute.xlu0 %473
        %475 = vrot.lane.b32.xlu0 %v347, 6
        %v476 = vpop.permute.xlu0 %475
        %477 = vrot.lane.b32.xlu0 %v348, 6
        %v478 = vpop.permute.xlu0 %477
        %479 = vrot.lane.b32.xlu0 %v349, 6
        %v480 = vpop.permute.xlu0 %479
        %481 = vrot.lane.b32.xlu0 %v350, 6
        %v482 = vpop.permute.xlu0 %481
        %vm491 = vcmask 162968
        %492 = vst.msk [vmem:[#allocation2] sm:$0xff] %vm491, %v468
        %493 = vst.msk [vmem:[#allocation2 + $0x8] sm:$0xff] %vm491, %v470
        %494 = vst.msk [vmem:[#allocation2 + $0x10] sm:$0xff] %vm491, %v472
        %495 = vst.msk [vmem:[#allocation2 + $0x18] sm:$0xff] %vm491, %v474
        %496 = vst.msk [vmem:[#allocation2 + $0x20] sm:$0xff] %vm491, %v476
        %497 = vst.msk [vmem:[#allocation2 + $0x28] sm:$0xff] %vm491, %v478
        %498 = vst.msk [vmem:[#allocation2 + $0x30] sm:$0xff] %vm491, %v480
        %499 = vst.msk [vmem:[#allocation2 + $0x38] sm:$0xff] %vm491, %v482
        %v500 = vld [vmem:[#allocation2] sm:$0xff]
        %v501 = vld [vmem:[#allocation2 + $0x8] sm:$0xff]
        %v502 = vld [vmem:[#allocation2 + $0x10] sm:$0xff]
        %v503 = vld [vmem:[#allocation2 + $0x18] sm:$0xff]
        %v504 = vld [vmem:[#allocation2 + $0x20] sm:$0xff]
        %v505 = vld [vmem:[#allocation2 + $0x28] sm:$0xff]
        %v506 = vld [vmem:[#allocation2 + $0x30] sm:$0xff]
        %v507 = vld [vmem:[#allocation2 + $0x38] sm:$0xff]
        %v508 = vmul.f32 %v500, 0.054488685
        %v509 = vmul.f32 %v501, 0.054488685
        %v510 = vmul.f32 %v502, 0.054488685
        %v511 = vmul.f32 %v503, 0.054488685
        %v512 = vmul.f32 %v504, 0.054488685
        %v513 = vmul.f32 %v505, 0.054488685
        %v514 = vmul.f32 %v506, 0.054488685
        %v515 = vmul.f32 %v507, 0.054488685
        %v516 = vmul.f32 %v500, 0.24420135
        %v517 = vmul.f32 %v501, 0.24420135
        %v518 = vmul.f32 %v502, 0.24420135
        %v519 = vmul.f32 %v503, 0.24420135
        %v520 = vmul.f32 %v504, 0.24420135
        %v521 = vmul.f32 %v505, 0.24420135
        %v522 = vmul.f32 %v506, 0.24420135
        %v523 = vmul.f32 %v507, 0.24420135
        %532 = vrot.lane.b32.xlu0 %v516, 127
        %v533 = vpop.permute.xlu0 %532
        %534 = vrot.lane.b32.xlu0 %v517, 127
        %v535 = vpop.permute.xlu0 %534
        %536 = vrot.lane.b32.xlu0 %v518, 127
        %v537 = vpop.permute.xlu0 %536
        %538 = vrot.lane.b32.xlu0 %v519, 127
        %v539 = vpop.permute.xlu0 %538
        %540 = vrot.lane.b32.xlu0 %v520, 127
        %v541 = vpop.permute.xlu0 %540
        %542 = vrot.lane.b32.xlu0 %v521, 127
        %v543 = vpop.permute.xlu0 %542
        %544 = vrot.lane.b32.xlu0 %v522, 127
        %v545 = vpop.permute.xlu0 %544
        %546 = vrot.lane.b32.xlu0 %v523, 127
        %v547 = vpop.permute.xlu0 %546
        %v556 = vadd.f32 %v508, %v533
        %v557 = vadd.f32 %v509, %v535
        %v558 = vadd.f32 %v510, %v537
        %v559 = vadd.f32 %v511, %v539
        %v560 = vadd.f32 %v512, %v541
        %v561 = vadd.f32 %v513, %v543
        %v562 = vadd.f32 %v514, %v545
        %v563 = vadd.f32 %v515, %v547
        %v564 = vmul.f32 %v500, 0.40261996
        %v565 = vmul.f32 %v501, 0.40261996
        %v566 = vmul.f32 %v502, 0.40261996
        %v567 = vmul.f32 %v503, 0.40261996
        %v568 = vmul.f32 %v504, 0.40261996
        %v569 = vmul.f32 %v505, 0.40261996
        %v570 = vmul.f32 %v506, 0.40261996
        %v571 = vmul.f32 %v507, 0.40261996
        %580 = vrot.lane.b32.xlu0 %v564, 126
        %v581 = vpop.permute.xlu0 %580
        %582 = vrot.lane.b32.xlu0 %v565, 126
        %v583 = vpop.permute.xlu0 %582
        %584 = vrot.lane.b32.xlu0 %v566, 126
        %v585 = vpop.permute.xlu0 %584
        %586 = vrot.lane.b32.xlu0 %v567, 126
        %v587 = vpop.permute.xlu0 %586
        %588 = vrot.lane.b32.xlu0 %v568, 126
        %v589 = vpop.permute.xlu0 %588
        %590 = vrot.lane.b32.xlu0 %v569, 126
        %v591 = vpop.permute.xlu0 %590
        %592 = vrot.lane.b32.xlu0 %v570, 126
        %v593 = vpop.permute.xlu0 %592
        %594 = vrot.lane.b32.xlu0 %v571, 126
        %v595 = vpop.permute.xlu0 %594
        %v604 = vadd.f32 %v556, %v581
        %v605 = vadd.f32 %v557, %v583
        %v606 = vadd.f32 %v558, %v585
        %v607 = vadd.f32 %v559, %v587
        %v608 = vadd.f32 %v560, %v589
        %v609 = vadd.f32 %v561, %v591
        %v610 = vadd.f32 %v562, %v593
        %v611 = vadd.f32 %v563, %v595
        %612 = vrot.lane.b32.xlu0 %v516, 125
        %v613 = vpop.permute.xlu0 %612
        %614 = vrot.lane.b32.xlu0 %v517, 125
        %v615 = vpop.permute.xlu0 %614
        %616 = vrot.lane.b32.xlu0 %v518, 125
        %v617 = vpop.permute.xlu0 %616
        %618 = vrot.lane.b32.xlu0 %v519, 125
        %v619 = vpop.permute.xlu0 %618
        %620 = vrot.lane.b32.xlu0 %v520, 125
        %v621 = vpop.permute.xlu0 %620
        %622 = vrot.lane.b32.xlu0 %v521, 125
        %v623 = vpop.permute.xlu0 %622
        %624 = vrot.lane.b32.xlu0 %v522, 125
        %v625 = vpop.permute.xlu0 %624
        %626 = vrot.lane.b32.xlu0 %v523, 125
        %v627 = vpop.permute.xlu0 %626
        %v636 = vadd.f32 %v604, %v613
        %v637 = vadd.f32 %v605, %v615
        %v638 = vadd.f32 %v606, %v617
        %v639 = vadd.f32 %v607, %v619
        %v640 = vadd.f32 %v608, %v621
        %v641 = vadd.f32 %v609, %v623
        %v642 = vadd.f32 %v610, %v625
        %v643 = vadd.f32 %v611, %v627
        %652 = vrot.lane.b32.xlu0 %v508, 124
        %v653 = vpop.permute.xlu0 %652
        %654 = vrot.lane.b32.xlu0 %v509, 124
        %v655 = vpop.permute.xlu0 %654
        %656 = vrot.lane.b32.xlu0 %v510, 124
        %v657 = vpop.permute.xlu0 %656
        %658 = vrot.lane.b32.xlu0 %v511, 124
        %v659 = vpop.permute.xlu0 %658
        %660 = vrot.lane.b32.xlu0 %v512, 124
        %v661 = vpop.permute.xlu0 %660
        %662 = vrot.lane.b32.xlu0 %v513, 124
        %v663 = vpop.permute.xlu0 %662
        %664 = vrot.lane.b32.xlu0 %v514, 124
        %v665 = vpop.permute.xlu0 %664
        %666 = vrot.lane.b32.xlu0 %v515, 124
        %v667 = vpop.permute.xlu0 %666
        %v676 = vadd.f32 %v636, %v653
        %v677 = vadd.f32 %v637, %v655
        %v678 = vadd.f32 %v638, %v657
        %v679 = vadd.f32 %v639, %v659
        %v680 = vadd.f32 %v640, %v661
        %v681 = vadd.f32 %v641, %v663
        %v682 = vadd.f32 %v642, %v665
        %v683 = vadd.f32 %v643, %v667
        %vm684 = vcmask 130048
        %685 = vst.msk [vmem:[#allocation3 + $0x2] sm:$0xff] %vm684, %v676
        %686 = vst.msk [vmem:[#allocation3 + $0xa] sm:$0xff] %vm684, %v677
        %687 = vst.msk [vmem:[#allocation3 + $0x1a] sm:$0xff] %vm684, %v678
        %688 = vst.msk [vmem:[#allocation3 + $0x22] sm:$0xff] %vm684, %v679
        %689 = vst.msk [vmem:[#allocation3 + $0x32] sm:$0xff] %vm684, %v680
        %690 = vst.msk [vmem:[#allocation3 + $0x3a] sm:$0xff] %vm684, %v681
        %691 = vst.msk [vmem:[#allocation3 + $0x4a] sm:$0xff] %vm684, %v682
        %692 = vst.msk [vmem:[#allocation3 + $0x52] sm:$0xff] %vm684, %v683
        %vm693 = vcmask 124930
        %694 = vst.msk [vmem:[#allocation3 - $0x2] sm:$0x4] %vm693, %v676
        %695 = vst.msk [vmem:[#allocation3 + $0x16] sm:$0x4] %vm693, %v678
        %696 = vst.msk [vmem:[#allocation3 + $0x2e] sm:$0x4] %vm693, %v680
        %697 = vst.msk [vmem:[#allocation3 + $0x46] sm:$0x4] %vm693, %v682
        %vm698 = vcmask 129030
        %699 = vst.msk [vmem:[#allocation3 + $0xc] sm:$0x40] %vm698, %v677
        %700 = vst.msk [vmem:[#allocation3 + $0x24] sm:$0x40] %vm698, %v679
        %701 = vst.msk [vmem:[#allocation3 + $0x3c] sm:$0x40] %vm698, %v681
        %702 = vst.msk [vmem:[#allocation3 + $0x54] sm:$0x40] %vm698, %v683
        %vm703 = vcmask 123905
        %704 = vst.msk [vmem:[#allocation3] sm:$0x2] %vm703, %v676
        %705 = vst.msk [vmem:[#allocation3 + $0x18] sm:$0x2] %vm703, %v678
        %706 = vst.msk [vmem:[#allocation3 + $0x30] sm:$0x2] %vm703, %v680
        %707 = vst.msk [vmem:[#allocation3 + $0x48] sm:$0x2] %vm703, %v682
        %vm708 = vcmask 128005
        %709 = vst.msk [vmem:[#allocation3 + $0xe] sm:$0x20] %vm708, %v677
        %710 = vst.msk [vmem:[#allocation3 + $0x26] sm:$0x20] %vm708, %v679
        %711 = vst.msk [vmem:[#allocation3 + $0x3e] sm:$0x20] %vm708, %v681
        %712 = vst.msk [vmem:[#allocation3 + $0x56] sm:$0x20] %vm708, %v683
        %v713 = vld [vmem:[#allocation3] sm:$0xff]
        %v714 = vld [vmem:[#allocation3 + $0x8] sm:$0xff]
        %v715 = vld [vmem:[#allocation3 + $0x18] sm:$0xff]
        %v716 = vld [vmem:[#allocation3 + $0x20] sm:$0xff]
        %v717 = vld [vmem:[#allocation3 + $0x30] sm:$0xff]
        %v718 = vld [vmem:[#allocation3 + $0x38] sm:$0xff]
        %v719 = vld [vmem:[#allocation3 + $0x48] sm:$0xff]
        %v720 = vld [vmem:[#allocation3 + $0x50] sm:$0xff]
        %v721 = vmul.f32 %v713, 0.054488685
        %v722 = vmul.f32 %v714, 0.054488685
        %v723 = vmul.f32 %v715, 0.054488685
        %v724 = vmul.f32 %v716, 0.054488685
        %v725 = vmul.f32 %v717, 0.054488685
        %v726 = vmul.f32 %v718, 0.054488685
        %v727 = vmul.f32 %v719, 0.054488685
        %v728 = vmul.f32 %v720, 0.054488685
        %v729 = vld [vmem:[#allocation3 + $0x1] sm:$0xff]
        %v730 = vld [vmem:[#allocation3 + $0x9] sm:$0xff]
        %v731 = vld [vmem:[#allocation3 + $0x19] sm:$0xff]
        %v732 = vld [vmem:[#allocation3 + $0x21] sm:$0xff]
        %v733 = vld [vmem:[#allocation3 + $0x31] sm:$0xff]
        %v734 = vld [vmem:[#allocation3 + $0x39] sm:$0xff]
        %v735 = vld [vmem:[#allocation3 + $0x49] sm:$0xff]
        %v736 = vld [vmem:[#allocation3 + $0x51] sm:$0xff]
        %v737 = vmul.f32 %v729, 0.24420135
        %v738 = vmul.f32 %v730, 0.24420135
        %v739 = vmul.f32 %v731, 0.24420135
        %v740 = vmul.f32 %v732, 0.24420135
        %v741 = vmul.f32 %v733, 0.24420135
        %v742 = vmul.f32 %v734, 0.24420135
        %v743 = vmul.f32 %v735, 0.24420135
        %v744 = vmul.f32 %v736, 0.24420135
        %v745 = vadd.f32 %v721, %v737
        %v746 = vadd.f32 %v722, %v738
        %v747 = vadd.f32 %v723, %v739
        %v748 = vadd.f32 %v724, %v740
        %v749 = vadd.f32 %v725, %v741
        %v750 = vadd.f32 %v726, %v742
        %v751 = vadd.f32 %v727, %v743
        %v752 = vadd.f32 %v728, %v744
        %v753 = vld [vmem:[#allocation3 + $0x2] sm:$0xff]
        %v754 = vld [vmem:[#allocation3 + $0xa] sm:$0xff]
        %v755 = vld [vmem:[#allocation3 + $0x1a] sm:$0xff]
        %v756 = vld [vmem:[#allocation3 + $0x22] sm:$0xff]
        %v757 = vld [vmem:[#allocation3 + $0x32] sm:$0xff]
        %v758 = vld [vmem:[#allocation3 + $0x3a] sm:$0xff]
        %v759 = vld [vmem:[#allocation3 + $0x4a] sm:$0xff]
        %v760 = vld [vmem:[#allocation3 + $0x52] sm:$0xff]
        %v761 = vmul.f32 %v753, 0.40261996
        %v762 = vmul.f32 %v754, 0.40261996
        %v763 = vmul.f32 %v755, 0.40261996
        %v764 = vmul.f32 %v756, 0.40261996
        %v765 = vmul.f32 %v757, 0.40261996
        %v766 = vmul.f32 %v758, 0.40261996
        %v767 = vmul.f32 %v759, 0.40261996
        %v768 = vmul.f32 %v760, 0.40261996
        %v769 = vadd.f32 %v745, %v761
        %v770 = vadd.f32 %v746, %v762
        %v771 = vadd.f32 %v747, %v763
        %v772 = vadd.f32 %v748, %v764
        %v773 = vadd.f32 %v749, %v765
        %v774 = vadd.f32 %v750, %v766
        %v775 = vadd.f32 %v751, %v767
        %v776 = vadd.f32 %v752, %v768
        %v777 = vld [vmem:[#allocation3 + $0x3] sm:$0xff]
        %v778 = vld [vmem:[#allocation3 + $0xb] sm:$0xff]
        %v779 = vld [vmem:[#allocation3 + $0x1b] sm:$0xff]
        %v780 = vld [vmem:[#allocation3 + $0x23] sm:$0xff]
        %v781 = vld [vmem:[#allocation3 + $0x33] sm:$0xff]
        %v782 = vld [vmem:[#allocation3 + $0x3b] sm:$0xff]
        %v783 = vld [vmem:[#allocation3 + $0x4b] sm:$0xff]
        %v784 = vld [vmem:[#allocation3 + $0x53] sm:$0xff]
        %v785 = vmul.f32 %v777, 0.24420135
        %v786 = vmul.f32 %v778, 0.24420135
        %v787 = vmul.f32 %v779, 0.24420135
        %v788 = vmul.f32 %v780, 0.24420135
        %v789 = vmul.f32 %v781, 0.24420135
        %v790 = vmul.f32 %v782, 0.24420135
        %v791 = vmul.f32 %v783, 0.24420135
        %v792 = vmul.f32 %v784, 0.24420135
        %v793 = vadd.f32 %v769, %v785
        %v794 = vadd.f32 %v770, %v786
        %v795 = vadd.f32 %v771, %v787
        %v796 = vadd.f32 %v772, %v788
        %v797 = vadd.f32 %v773, %v789
        %v798 = vadd.f32 %v774, %v790
        %v799 = vadd.f32 %v775, %v791
        %v800 = vadd.f32 %v776, %v792
        %v801 = vld [vmem:[#allocation3 + $0x4] sm:$0xff]
        %v802 = vld [vmem:[#allocation3 + $0xc] sm:$0xff]
        %v803 = vld [vmem:[#allocation3 + $0x1c] sm:$0xff]
        %v804 = vld [vmem:[#allocation3 + $0x24] sm:$0xff]
        %v805 = vld [vmem:[#allocation3 + $0x34] sm:$0xff]
        %v806 = vld [vmem:[#allocation3 + $0x3c] sm:$0xff]
        %v807 = vld [vmem:[#allocation3 + $0x4c] sm:$0xff]
        %v808 = vld [vmem:[#allocation3 + $0x54] sm:$0xff]
        %v809 = vmul.f32 %v801, 0.054488685
        %v810 = vmul.f32 %v802, 0.054488685
        %v811 = vmul.f32 %v803, 0.054488685
        %v812 = vmul.f32 %v804, 0.054488685
        %v813 = vmul.f32 %v805, 0.054488685
        %v814 = vmul.f32 %v806, 0.054488685
        %v815 = vmul.f32 %v807, 0.054488685
        %v816 = vmul.f32 %v808, 0.054488685
        %v817 = vadd.f32 %v793, %v809
        %v818 = vadd.f32 %v794, %v810
        %v819 = vadd.f32 %v795, %v811
        %v820 = vadd.f32 %v796, %v812
        %v821 = vadd.f32 %v797, %v813
        %v822 = vadd.f32 %v798, %v814
        %v823 = vadd.f32 %v799, %v815
        %v824 = vadd.f32 %v800, %v816
        %s825 = sld [smem:[#allocation4 + %s30]]
        %v826 = vld [vmem:[%s282] sm:$0xff]
        %v827 = vld [vmem:[%s282 + $0x8] sm:$0xff]
        %v828 = vld [vmem:[%s282 + $0x10] sm:$0xff]
        %v829 = vld [vmem:[%s282 + $0x18] sm:$0xff]
        %v830 = vld [vmem:[%s282 + $0x20] sm:$0xff]
        %v831 = vld [vmem:[%s282 + $0x28] sm:$0xff]
        %v832 = vld [vmem:[%s282 + $0x30] sm:$0xff]
        %v833 = vld [vmem:[%s282 + $0x38] sm:$0xff]
        %v834 = vstv %s825
        %v835 = vmul.f32 %v834, %v826
        %v836 = vmul.f32 %v834, %v827
        %v837 = vmul.f32 %v834, %v828
        %v838 = vmul.f32 %v834, %v829
        %v839 = vmul.f32 %v834, %v830
        %v840 = vmul.f32 %v834, %v831
        %v841 = vmul.f32 %v834, %v832
        %v842 = vmul.f32 %v834, %v833
        %s843 = ssub.f32 1.0, %s825
        %v844 = vstv %s843
        %v845 = vmul.f32 %v844, %v817
        %v846 = vmul.f32 %v844, %v818
        %v847 = vmul.f32 %v844, %v819
        %v848 = vmul.f32 %v844, %v820
        %v849 = vmul.f32 %v844, %v821
        %v850 = vmul.f32 %v844, %v822
        %v851 = vmul.f32 %v844, %v823
        %v852 = vmul.f32 %v844, %v824
        %v853 = vadd.f32 %v835, %v845
        %v854 = vadd.f32 %v836, %v846
        %v855 = vadd.f32 %v837, %v847
        %v856 = vadd.f32 %v838, %v848
        %v857 = vadd.f32 %v839, %v849
        %v858 = vadd.f32 %v840, %v850
        %v859 = vadd.f32 %v841, %v851
        %v860 = vadd.f32 %v842, %v852
        %861 = vst.msk [vmem:[%s335] sm:$0xff] %vm684, %v853
        %862 = vst.msk [vmem:[%s335 + $0x8] sm:$0xff] %vm684, %v854
        %863 = vst.msk [vmem:[%s335 + $0x10] sm:$0xff] %vm684, %v855
        %864 = vst.msk [vmem:[%s335 + $0x18] sm:$0xff] %vm684, %v856
        %865 = vst.msk [vmem:[%s335 + $0x20] sm:$0xff] %vm684, %v857
        %866 = vst.msk [vmem:[%s335 + $0x28] sm:$0xff] %vm684, %v858
        %867 = vst.msk [vmem:[%s335 + $0x30] sm:$0xff] %vm684, %v859
        %868 = vst.msk [vmem:[%s335 + $0x38] sm:$0xff] %vm684, %v860
        %v869 = vld [vmem:[%s300] sm:$0xff]
        %v870 = vld [vmem:[%s300 + $0x8] sm:$0xff]
        %v871 = vld [vmem:[%s300 + $0x10] sm:$0xff]
        %v872 = vld [vmem:[%s300 + $0x18] sm:$0xff]
        %v873 = vld [vmem:[%s300 + $0x20] sm:$0xff]
        %v874 = vld [vmem:[%s300 + $0x28] sm:$0xff]
        %v875 = vld [vmem:[%s300 + $0x30] sm:$0xff]
        %v876 = vld [vmem:[%s300 + $0x38] sm:$0xff]
        %v877 = vsub.f32 %v343, %v869
        %v878 = vsub.f32 %v344, %v870
        %v879 = vsub.f32 %v345, %v871
        %v880 = vsub.f32 %v346, %v872
        %v881 = vsub.f32 %v347, %v873
        %v882 = vsub.f32 %v348, %v874
        %v883 = vsub.f32 %v349, %v875
        %v884 = vsub.f32 %v350, %v876
        %v885 = vmul.f32 %v877, %v877
        %v886 = vmul.f32 %v878, %v878
        %v887 = vmul.f32 %v879, %v879
        %v888 = vmul.f32 %v880, %v880
        %v889 = vmul.f32 %v881, %v881
        %v890 = vmul.f32 %v882, %v882
        %v891 = vmul.f32 %v883, %v883
        %v892 = vmul.f32 %v884, %v884
        %v893 = vsel %vm684, %v885, 0.0
        %v894 = vsel %vm684, %v886, 0.0
        %v895 = vadd.f32 %v893, %v894
        %v896 = vsel %vm684, %v887, 0.0
        %v897 = vadd.f32 %v895, %v896
        %v898 = vsel %vm684, %v888, 0.0
        %v899 = vadd.f32 %v897, %v898
        %v900 = vsel %vm684, %v889, 0.0
        %v901 = vadd.f32 %v899, %v900
        %v902 = vsel %vm684, %v890, 0.0
        %v903 = vadd.f32 %v901, %v902
        %v904 = vsel %vm684, %v891, 0.0
        %v905 = vadd.f32 %v903, %v904
        %v906 = vsel %vm684, %v892, 0.0
        %v907 = vadd.f32 %v905, %v906
        %908 = vadd.xlane.f32.xlu0 %v907
        %v909 = vpop.xlane.xlu0 %908
        %v910 = vrot.slane %v909, 4
        %v911 = vadd.f32 %v909, %v910
        %v912 = vrot.slane %v911, 2
        %v913 = vadd.f32 %v911, %v912
        %v914 = vrot.slane %v913, 1
        %v915 = vadd.f32 %v913, %v914
        %s916 = vtos %v915
        %s917 = smul.f32 %s916, 0.0009765625
        %v918 = vstv %s917
        %919 = vst [vmem:[%s342] sm:$0xff] %v918
        %s920 = sand.u32 %s137, 1
        %s921 = scalar_lea.sflag [#allocation6], %s920
        %s922 = sand.u32 %s137, 1
        %s923 = smul.addr %s922, 64
        %s924 = scalar_lea.vmem [#allocation12], %s923
        %s925 = sand.u32 %s163, 1
        %s926 = scalar_lea.sflag [#allocation14], %s925
        %s927 = sand.u32 %s163, 1
        %s928 = smul.addr %s927, 8
        %s929 = scalar_lea.vmem [#allocation13], %s928
        // Predicated region
        $region53: #{tpu_custom_call.1} parent=35 // pred_check
          %p930 = pneg %p147
        $region54: #{tpu_custom_call.1} parent=35 // pred_check_branch
          %932 = sbr.rel (%p930) target = $region56
        $region55: #{tpu_custom_call.1} parent=35 // pred_region
          %s934 = ssub.s32 1024, 1024
          %935 = vsyncadd %s921, %s934
          %s936 = smul.addr %s30, 8
          %s937 = smul.addr %s936, 128
          %s938 = scalar_lea.hbm %s4, %s937
          %s939 = sshll.u32 %s924, 4
          %s940 = int_to_ptr.vmem [resolvable:$true] %s939
          %945 = dma.vmem_to_hbm [thread:$0]  %s940, 1024, %s938, %s921, 128, 128, 8
        $region56: #{tpu_custom_call.1} parent=35 // pred_fallthru
          _
        // Predicated region
        $region57: #{tpu_custom_call.1} parent=35 // pred_check
          %p946 = pneg %p173
        $region58: #{tpu_custom_call.1} parent=35 // pred_check_branch
          %948 = sbr.rel (%p946) target = $region60
        $region59: #{tpu_custom_call.1} parent=35 // pred_region
          %s950 = ssub.s32 128, 128
          %951 = vsyncadd %s926, %s950
          %s952 = smul.addr %s30, 128
          %s953 = scalar_lea.hbm %s5, %s952
          %s955 = sshll.u32 %s929, 4
          %s956 = int_to_ptr.vmem [resolvable:$true] %s955
          %958 = dma.vmem_to_hbm [thread:$0]  %s956, 128, %s953, %s926
        $region60: #{tpu_custom_call.1} parent=35 // pred_fallthru
          _
      $region36: #{tpu_custom_call.1} parent=5 // pred_fallthru
        _
      %p959 = scmp.le.s32.totalorder 2, %s25
      // Predicated region
      $region61: #{tpu_custom_call.1} parent=5 // pred_check
        %p960 = pneg %p959
      $region62: #{tpu_custom_call.1} parent=5 // pred_check_branch
        %962 = sbr.rel (%p960) target = $region64
      $region63: #{tpu_custom_call.1} parent=5 // pred_region
        %s963 = ssub.s32 %s25, 2
        // Predicated region
        $region65: #{tpu_custom_call.1} parent=63 // pred_check
          %p964 = pneg %p153
        $region66: #{tpu_custom_call.1} parent=63 // pred_check_branch
          %966 = sbr.rel (%p964) target = $region68
        $region67: #{tpu_custom_call.1} parent=63 // pred_region
          %s967 = sand.u32 %s138, 1
          %s968 = scalar_lea.sflag [#allocation6], %s967
          %s969 = sand.u32 %s138, 1
          %s970 = smul.addr %s969, 64
          %s971 = scalar_lea.vmem [#allocation12], %s970
          %972 = dma.done %s968, 1024
        $region68: #{tpu_custom_call.1} parent=63 // pred_fallthru
          _
        // Predicated region
        $region69: #{tpu_custom_call.1} parent=63 // pred_check
          %p973 = pneg %p179
        $region70: #{tpu_custom_call.1} parent=63 // pred_check_branch
          %975 = sbr.rel (%p973) target = $region72
        $region71: #{tpu_custom_call.1} parent=63 // pred_region
          %s976 = sand.u32 %s164, 1
          %s977 = scalar_lea.sflag [#allocation14], %s976
          %s978 = sand.u32 %s164, 1
          %s979 = smul.addr %s978, 8
          %s980 = scalar_lea.vmem [#allocation13], %s979
          %981 = dma.done %s977, 128
        $region72: #{tpu_custom_call.1} parent=63 // pred_fallthru
          _
      $region64: #{tpu_custom_call.1} parent=5 // pred_fallthru
        _
    $region6: #{tpu_custom_call.1} parent=1 // loop_footer
      %s29 = sadd.s32 1, %s25
    $region7: #{tpu_custom_call.1} parent=1 // loop_footer_branch
      %24 = sbr.rel target = $region3
    $region8: #{tpu_custom_call.1} parent=1 // loop_exit
      _
    %982 = vsyncpa [#allocation5], 1
    %s983 = scalar_lea.sflag [#allocation5], 1
    %984 = vsyncpa %s983, 1
    %985 = vsyncpa [#allocation10], 1
    %s986 = scalar_lea.sflag [#allocation10], 1
    %987 = vsyncpa %s986, 1
    %988 = vsyncpa [#allocation6], 1
    %s989 = scalar_lea.sflag [#allocation6], 1
    %990 = vsyncpa %s989, 1
    %991 = vsyncpa [#allocation14], 1
    %s992 = scalar_lea.sflag [#allocation14], 1
    %993 = vsyncpa %s992, 1
    %994 = vsyncpa [#allocation7], 1
    %s995 = scalar_lea.sflag [#allocation7], 1
    %996 = vsyncpa %s995, 1

</llo_original>
